<compile_context>
chip_gen: v7x
topology: tpu7x:2x2x1
jax: 0.10.0
libtpu: 0.0.40
codegen_flags: <defaults>
</compile_context>

<pallas_src>
import functools

import jax
import jax.numpy as jnp
from jax import lax
from jax.experimental import pallas as pl
from jax.experimental.pallas import tpu as pltpu


def _round_up(x, m):
    return ((x + m - 1) // m) * m


def _cos_sum_kernel(x1_ref, x2_ref, out_ref, acc_ref, *, batch, tile,
                    steps_per_part, masked):
    """Accumulate sum_i cosine_similarity(x1_i, x2_i) over this partition's tiles.

    x1_ref / x2_ref : (tile, D) blocks, batch rows on sublanes, features on lanes.
    out_ref         : (1, 8, 128) per-partition output block (partial sum broadcast).
    acc_ref         : SMEM (1,) f32 running sum for the current partition.
    """
    p = pl.program_id(0)
    s = pl.program_id(1)

    @pl.when(s == 0)
    def _init():
        acc_ref[0] = jnp.float32(0.0)

    x1 = x1_ref[...].astype(jnp.float32)
    x2 = x2_ref[...].astype(jnp.float32)

    # cosine similarity per row (PyTorch dim=1, eps=1e-8):
    #   cos = <x1,x2> / max(||x1|| * ||x2||, eps)
    w12 = jnp.sum(x1 * x2, axis=-1, keepdims=True)
    w1 = jnp.sum(x1 * x1, axis=-1, keepdims=True)
    w2 = jnp.sum(x2 * x2, axis=-1, keepdims=True)
    eps = jnp.float32(1e-8)
    cos = w12 * lax.rsqrt(jnp.maximum(w1 * w2, eps * eps))

    if masked:
        # Only emitted (statically) when some logical tile pads past the batch.
        tile_id = p * steps_per_part + s
        row = tile_id * tile + lax.broadcasted_iota(jnp.int32, cos.shape, 0)
        cos = jnp.where(row < batch, cos, jnp.float32(0.0))

    # Per-step scalar accumulate; per-step DMA is multi-microsecond at these tile
    # sizes, so the SMEM read-modify-write dependency stays fully hidden.
    acc_ref[0] += jnp.sum(cos)

    @pl.when(s == pl.num_programs(1) - 1)
    def _finalize():
        out_ref[...] = jnp.full(out_ref.shape, acc_ref[0], dtype=jnp.float32)


def _choose_tile(batch, row_bytes_f32, budget_bytes, block_rows=None):
    """Pick a batch tile from a per-buffer VMEM byte budget (not a row cap)."""
    if block_rows is not None:
        tile = int(block_rows)
    else:
        tile = max(8, budget_bytes // row_bytes_f32)
    if tile >= batch:
        return batch
    return max(8, (tile // 8) * 8)


def _cosine_similarity_sum(output1, output2, *, block_rows=None, num_partitions=2):
    """Sum over the batch of cosine_similarity(output1, output2, dim=1)."""
    assert output1.shape == output2.shape and output1.ndim == 2
    B, D = output1.shape
    itemsize = output1.dtype.itemsize

    # Per-buffer VMEM budget derived from the chip: vmem/16 per pipeline buffer
    # (2 inputs x 2 pipeline buffers) -> ~4 MiB on v7x (64 MiB), ~8 MiB on v5e/v6e.
    try:
        vmem_cap = int(pltpu.get_tpu_info().vmem_capacity_bytes)
    except Exception:  # conservative fallback: works on every generation
        vmem_cap = 64 * 1024 * 1024
    per_buffer_budget = vmem_cap // 16

    # VMEM footprint of a (tile, D) block: lanes pad up to a multiple of 128.
    lanes = _round_up(D, 128)
    row_bytes_f32 = lanes * 4
    tile = _choose_tile(B, row_bytes_f32, per_buffer_budget, block_rows)

    n_tiles = pl.cdiv(B, tile)
    parts = max(1, min(num_partitions, n_tiles))   # leading "parallel" axis (v7x: 2 TCs)
    steps = pl.cdiv(n_tiles, parts)                # trailing reduction axis
    masked = (parts * steps * tile) != B           # static: emit mask only if needed

    if parts * steps == n_tiles:
        in_index_map = lambda p, s: (p * steps + s, 0)
    else:
        last_tile = n_tiles - 1                    # clamp phantom tiles; mask zeroes them
        in_index_map = lambda p, s: (jnp.minimum(p * steps + s, last_tile), 0)

    # VMEM limit tracks the chosen tile: 4 pipelined input buffers + f32 temporaries.
    block_in_bytes = tile * lanes * itemsize
    block_f32_bytes = tile * row_bytes_f32
    vmem_limit = 4 * block_in_bytes + 4 * block_f32_bytes + (8 << 20)
    vmem_limit = min(max(vmem_limit, 32 << 20), (vmem_cap * 3) // 4)

    kernel = functools.partial(
        _cos_sum_kernel, batch=B, tile=tile, steps_per_part=steps, masked=masked)

    out = pl.pallas_call(
        kernel,
        out_shape=jax.ShapeDtypeStruct((parts, 8, 128), jnp.float32),
        grid_spec=pltpu.PrefetchScalarGridSpec(
            num_scalar_prefetch=0,
            grid=(parts, steps),
            in_specs=[
                pl.BlockSpec((tile, D), in_index_map),
                pl.BlockSpec((tile, D), in_index_map),
            ],
            out_specs=pl.BlockSpec((1, 8, 128), lambda p, s: (p, 0, 0)),
            scratch_shapes=[pltpu.SMEM((1,), jnp.float32)],
        ),
        compiler_params=pltpu.CompilerParams(
            dimension_semantics=("parallel", "arbitrary"),
            vmem_limit_bytes=int(vmem_limit),
        ),
    )(output1, output2)

    # One partial per partition (per TensorCore on v7x); tiny final sum in XLA.
    return jnp.sum(out[:, 0, 0])


def siam_regqc_loss(output1, output2, *, block_rows=None, num_partitions=2):
    """1 - mean(cosine_similarity(output1, output2, dim=1)) via the Pallas kernel."""
    B = output1.shape[0]
    cos_sum = _cosine_similarity_sum(output1, output2, block_rows=block_rows,
                                     num_partitions=num_partitions)
    return jnp.float32(1.0) - cos_sum / jnp.float32(B)


def _reference(output1, output2):
    x1 = output1.astype(jnp.float32)
    x2 = output2.astype(jnp.float32)
    eps = jnp.float32(1e-8)
    w12 = jnp.sum(x1 * x2, axis=-1)
    w1 = jnp.sum(x1 * x1, axis=-1)
    w2 = jnp.sum(x2 * x2, axis=-1)
    cos = w12 * lax.rsqrt(jnp.maximum(w1 * w2, eps * eps))
    return jnp.float32(1.0) - jnp.mean(cos)


if __name__ == "__main__":
    key = jax.random.PRNGKey(0)
    k1, k2, k3, k4 = jax.random.split(key, 4)

    # Primary demo: small Siamese embeddings (what model.forward_one would emit).
    B, D = 8, 32
    out1 = jax.random.normal(k1, (B, D), dtype=jnp.float32)
    out2 = jax.random.normal(k2, (B, D), dtype=jnp.float32)
    loss = jax.block_until_ready(siam_regqc_loss(out1, out2))
    ref = _reference(out1, out2)
    assert jnp.allclose(loss, ref, atol=1e-5, rtol=1e-5), (loss, ref)

    # Multi-tile, D >= 128, ragged last tile, 2 partitions (one phantom tile clamped).
    B2, D2 = 300, 256
    a1 = jax.random.normal(k3, (B2, D2), dtype=jnp.float32)
    a2 = jax.random.normal(k4, (B2, D2), dtype=jnp.float32)
    loss2 = jax.block_until_ready(siam_regqc_loss(a1, a2, block_rows=128))
    ref2 = _reference(a1, a2)
    assert jnp.allclose(loss2, ref2, atol=1e-5, rtol=1e-5), (loss2, ref2)

    # Multi-tile, D < 128 — now kept in (B, D) layout (no wrapper transpose).
    B3, D3 = 300, 64
    b1 = jax.random.normal(k1, (B3, D3), dtype=jnp.float32)
    b2 = jax.random.normal(k2, (B3, D3), dtype=jnp.float32)
    loss3 = jax.block_until_ready(siam_regqc_loss(b1, b2, block_rows=128))
    ref3 = _reference(b1, b2)
    assert jnp.allclose(loss3, ref3, atol=1e-5, rtol=1e-5), (loss3, ref3)

    # bf16 embeddings streamed at native width (upcast in-kernel), even 2x2 tiling.
    B4, D4 = 512, 384
    c1 = jax.random.normal(k3, (B4, D4), dtype=jnp.bfloat16)
    c2 = jax.random.normal(k4, (B4, D4), dtype=jnp.bfloat16)
    loss4 = jax.block_until_ready(siam_regqc_loss(c1, c2, block_rows=128))
    ref4 = _reference(c1, c2)
    assert jnp.allclose(loss4, ref4, atol=2e-5, rtol=1e-5), (loss4, ref4)

    print("KERNEL_OK")
</pallas_src>

<mosaic_0001>
module attributes {stable_mosaic.version = 11 : i64} {
  func.func @_cos_sum_kernel(%arg0: i32, %arg1: i32, %arg2: memref<8x32xf32, #tpu.memory_space<vmem>>, %arg3: memref<8x32xf32, #tpu.memory_space<vmem>>, %arg4: memref<1x8x128xf32, #tpu.memory_space<vmem>>, %arg5: memref<1xf32, #tpu.memory_space<smem>>) attributes {dimension_semantics = [#tpu.dimension_semantics<parallel>, #tpu.dimension_semantics<arbitrary>], iteration_bounds = array<i64: 1, 1>, scalar_prefetch = 0 : i64, scratch_operands = 1 : i64, tpu.core_type = #tpu.core_type<tc>, window_params = [{transform_indices = @transform_0, window_bounds = array<i64: 8, 32>}, {transform_indices = @transform_1, window_bounds = array<i64: 8, 32>}, {transform_indices = @transform_2, window_bounds = array<i64: 1, 8, 128>}]} {
    %c0_i32 = arith.constant 0 : i32
    %0 = arith.cmpi eq, %arg1, %c0_i32 : i32
    %1 = arith.extui %0 : i1 to i32
    %c0_i32_0 = arith.constant 0 : i32
    %2 = arith.cmpi ne, %1, %c0_i32_0 : i32
    scf.if %2 {
      %cst_13 = arith.constant 0.000000e+00 : f32
      %c0_14 = arith.constant 0 : index
      %30 = memref.load %arg5[%c0_14] : memref<1xf32, #tpu.memory_space<smem>>
      memref.store %cst_13, %arg5[%c0_14] : memref<1xf32, #tpu.memory_space<smem>>
    } else {
    }
    %c0 = arith.constant 0 : index
    %c0_1 = arith.constant 0 : index
    %3 = vector.load %arg2[%c0, %c0_1] : memref<8x32xf32, #tpu.memory_space<vmem>>, vector<8x32xf32>
    %c0_2 = arith.constant 0 : index
    %c0_3 = arith.constant 0 : index
    %4 = vector.load %arg3[%c0_2, %c0_3] : memref<8x32xf32, #tpu.memory_space<vmem>>, vector<8x32xf32>
    %5 = arith.mulf %3, %4 : vector<8x32xf32>
    %cst = arith.constant dense<0.000000e+00> : vector<8xf32>
    %6 = vector.multi_reduction <add>, %5, %cst [1] : vector<8x32xf32> to vector<8xf32>
    %7 = vector.shape_cast %6 : vector<8xf32> to vector<8x1xf32>
    %8 = arith.mulf %3, %3 : vector<8x32xf32>
    %cst_4 = arith.constant dense<0.000000e+00> : vector<8xf32>
    %9 = vector.multi_reduction <add>, %8, %cst_4 [1] : vector<8x32xf32> to vector<8xf32>
    %10 = vector.shape_cast %9 : vector<8xf32> to vector<8x1xf32>
    %11 = arith.mulf %4, %4 : vector<8x32xf32>
    %cst_5 = arith.constant dense<0.000000e+00> : vector<8xf32>
    %12 = vector.multi_reduction <add>, %11, %cst_5 [1] : vector<8x32xf32> to vector<8xf32>
    %13 = vector.shape_cast %12 : vector<8xf32> to vector<8x1xf32>
    %14 = arith.mulf %10, %13 : vector<8x1xf32>
    %cst_6 = arith.constant 9.99999993E-9 : f32
    %cst_7 = arith.constant 9.99999993E-9 : f32
    %15 = arith.mulf %cst_6, %cst_7 : f32
    %16 = vector.broadcast %15 : f32 to vector<8x1xf32>
    %17 = arith.maximumf %14, %16 : vector<8x1xf32>
    %18 = math.rsqrt %17 : vector<8x1xf32>
    %19 = arith.mulf %7, %18 : vector<8x1xf32>
    %c0_8 = arith.constant 0 : index
    %20 = memref.load %arg5[%c0_8] : memref<1xf32, #tpu.memory_space<smem>>
    %21 = vector.shape_cast %19 : vector<8x1xf32> to vector<1x8x1xf32>
    %cst_9 = arith.constant dense<0.000000e+00> : vector<1xf32>
    %22 = vector.multi_reduction <add>, %21, %cst_9 [1, 2] : vector<1x8x1xf32> to vector<1xf32>
    %23 = vector.shape_cast %22 : vector<1xf32> to vector<1x1x1xf32>
    %24 = vector.extract %23[0, 0, 0] : f32 from vector<1x1x1xf32>
    %25 = arith.addf %20, %24 : f32
    %c0_10 = arith.constant 0 : index
    %26 = memref.load %arg5[%c0_10] : memref<1xf32, #tpu.memory_space<smem>>
    memref.store %25, %arg5[%c0_10] : memref<1xf32, #tpu.memory_space<smem>>
    %c0_i32_11 = arith.constant 0 : i32
    %27 = arith.cmpi eq, %arg1, %c0_i32_11 : i32
    %28 = arith.extui %27 : i1 to i32
    %c0_i32_12 = arith.constant 0 : i32
    %29 = arith.cmpi ne, %28, %c0_i32_12 : i32
    scf.if %29 {
      %c0_13 = arith.constant 0 : index
      %30 = memref.load %arg5[%c0_13] : memref<1xf32, #tpu.memory_space<smem>>
      %31 = vector.broadcast %30 : f32 to vector<1x8x128xf32>
      %c0_14 = arith.constant 0 : index
      %c0_15 = arith.constant 0 : index
      %c0_16 = arith.constant 0 : index
      %32 = vector.load %arg4[%c0_14, %c0_15, %c0_16] : memref<1x8x128xf32, #tpu.memory_space<vmem>>, vector<1x8x128xf32>
      tpu.vector_store %arg4[%c0_14, %c0_15, %c0_16], %31 {strides = array<i32>} : memref<1x8x128xf32, #tpu.memory_space<vmem>>, vector<1x8x128xf32>,
    } else {
    }
    return
  }
  func.func @transform_0(%arg0: i32, %arg1: i32) -> (i32, i32) {
    %c1_i32 = arith.constant 1 : i32
    %0 = arith.muli %arg0, %c1_i32 : i32
    %1 = arith.addi %0, %arg1 : i32
    %c0_i32 = arith.constant 0 : i32
    %c0_i32_0 = arith.constant 0 : i32
    return %1, %c0_i32 : i32, i32
  }
  func.func @transform_1(%arg0: i32, %arg1: i32) -> (i32, i32) {
    %c1_i32 = arith.constant 1 : i32
    %0 = arith.muli %arg0, %c1_i32 : i32
    %1 = arith.addi %0, %arg1 : i32
    %c0_i32 = arith.constant 0 : i32
    %c0_i32_0 = arith.constant 0 : i32
    return %1, %c0_i32 : i32, i32
  }
  func.func @transform_2(%arg0: i32, %arg1: i32) -> (i32, i32, i32) {
    %c0_i32 = arith.constant 0 : i32
    %c0_i32_0 = arith.constant 0 : i32
    %c0_i32_1 = arith.constant 0 : i32
    return %arg0, %c0_i32, %c0_i32_0 : i32, i32, i32
  }
}

</mosaic_0001>

<llo_original>
// kernel: tpu_custom_call.1
$region0: #{tpu_custom_call.1}
  #allocation0 [shape = 'u32[]', space=smem, size = 0x4, offset = 0x4, fixed_abs, tag = 'smem constant byte address 0x4 - core index']
  #allocation1 [shape = 'u32[144,128]{1,0:T(1,128)}', space=vmem, size = 0x12000, scoped, tag = 'internal scratch']
  #allocation2 [shape = 'f32[1]{0:T(128)}', space=smem, size = 0x200, scoped, tag = 'scratch operand']
  %s0 = inlined_call_operand.hbm [shape: f32[8,32], index: 0, kind: input, shape index: {}]
  %s1 = inlined_call_operand.hbm [shape: f32[8,32], index: 1, kind: input, shape index: {}]
  %s2 = inlined_call_operand.hbm [shape: f32[1,8,128], index: 2, kind: output, shape index: {}]
  %s3 = sld [smem:[#allocation0]]
  $region34: #{tpu_custom_call.1} parent=0
    _
  %s5 = ssub.s32 1, %s3
  %s6 = scalar_select 0, %s5, %s3
  $region1: #{tpu_custom_call.1} parent=0
    #allocation3 [shape = 'u8[4096]{0}', space=vmem, size = 0x1000, scoped, tag = 'input window, operand 0, single buffered']
    #allocation4 [shape = 's32[1]{0}', space=sflag, size = 0x4, scoped, tag = 'scoped memory for tpu_custom_call.1']
    #allocation5 [shape = 's32[1]{0}', space=sflag, size = 0x4, scoped, tag = 'scoped memory for tpu_custom_call.1']
    #allocation6 [shape = 'u8[4096]{0}', space=vmem, size = 0x1000, scoped, tag = 'input window, operand 1, single buffered']
    #allocation7 [shape = 's32[1]{0}', space=sflag, size = 0x4, scoped, tag = 'scoped memory for tpu_custom_call.1']
    #allocation8 [shape = 'u8[4096]{0}', space=vmem, size = 0x1000, scoped, tag = 'output window, operand 0, single buffered']
    %7 = vsyncpa [#allocation4], 0
    %8 = vsyncpa [#allocation7], 0
    %9 = vsyncpa [#allocation5], 0
    // Predicated region
    $region2: #{tpu_custom_call.1} parent=1 // pred_check
      _
    $region3: #{tpu_custom_call.1} parent=1 // pred_check_branch
      %11 = sbr.rel (0) target = $region5
    $region4: #{tpu_custom_call.1} parent=1 // pred_region
      %s12 = sadd.s32 0, 0
      %s14 = ssub.s32 128, 128
      %15 = vsyncadd [#allocation4], %s14
      %s16 = smul.addr %s12, 128
      %s17 = scalar_lea.hbm %s0, %s16
      %s19 = sshll.u32 [#allocation3], 4
      %s20 = int_to_ptr.vmem [resolvable:$true] %s19
      %22 = dma.hbm_to_vmem [thread:$0]  %s17, 128, %s20, [#allocation4]
    $region5: #{tpu_custom_call.1} parent=1 // pred_fallthru
      _
    // Predicated region
    $region6: #{tpu_custom_call.1} parent=1 // pred_check
      _
    $region7: #{tpu_custom_call.1} parent=1 // pred_check_branch
      %24 = sbr.rel (0) target = $region9
    $region8: #{tpu_custom_call.1} parent=1 // pred_region
      %s25 = sadd.s32 0, 0
      %s27 = ssub.s32 128, 128
      %28 = vsyncadd [#allocation7], %s27
      %s29 = smul.addr %s25, 128
      %s30 = scalar_lea.hbm %s1, %s29
      %s32 = sshll.u32 [#allocation6], 4
      %s33 = int_to_ptr.vmem [resolvable:$true] %s32
      %35 = dma.hbm_to_vmem [thread:$0]  %s30, 128, %s33, [#allocation7]
    $region9: #{tpu_custom_call.1} parent=1 // pred_fallthru
      _
    // Predicated region
    $region10: #{tpu_custom_call.1} parent=1 // pred_check
      _
    $region11: #{tpu_custom_call.1} parent=1 // pred_check_branch
      %37 = sbr.rel (0) target = $region13
    $region12: #{tpu_custom_call.1} parent=1 // pred_region
      %38 = dma.done [#allocation4], 128
    $region13: #{tpu_custom_call.1} parent=1 // pred_fallthru
      _
    // Predicated region
    $region14: #{tpu_custom_call.1} parent=1 // pred_check
      _
    $region15: #{tpu_custom_call.1} parent=1 // pred_check_branch
      %40 = sbr.rel (0) target = $region17
    $region16: #{tpu_custom_call.1} parent=1 // pred_region
      %41 = dma.done [#allocation7], 128
    $region17: #{tpu_custom_call.1} parent=1 // pred_fallthru
      _
    %s42 = sadd.s32 0, 0
    %s43 = sadd.s32 0, 0
    %p44 = scmp.eq.s32.totalorder 0, 0
    // Predicated region
    $region18: #{tpu_custom_call.1} parent=1 // pred_check
      %p45 = pneg %p44
    $region19: #{tpu_custom_call.1} parent=1 // pred_check_branch
      %47 = sbr.rel (%p45) target = $region21
    $region20: #{tpu_custom_call.1} parent=1 // pred_region
      %s48 = scalar_lea.smem [#allocation2], 0
      %49 = sst [smem:[%s48]] 0.0
    $region21: #{tpu_custom_call.1} parent=1 // pred_fallthru
      _
    %v50 = vld [vmem:[#allocation3] sm:$0xff]
    %v51 = vld [vmem:[#allocation6] sm:$0xff]
    %v52 = vmul.f32 %v50, %v51
    %vm53 = vcmask 261120
    %v54 = vsel %vm53, %v52, 0.0
    %55 = vadd.xlane.f32.xlu0 %v54
    %v56 = vpop.xlane.xlu0 %55
    %v57 = vmul.f32 %v50, %v50
    %v58 = vsel %vm53, %v57, 0.0
    %59 = vadd.xlane.f32.xlu0 %v58
    %v60 = vpop.xlane.xlu0 %59
    %v61 = vmul.f32 %v51, %v51
    %v62 = vsel %vm53, %v61, 0.0
    %63 = vadd.xlane.f32.xlu0 %v62
    %v64 = vpop.xlane.xlu0 %63
    %v65 = vmul.f32 %v60, %v64
    %v66 = vmax.f32 %v65, 1e-16
    %v67 = vrsqrt.pop %v66
    %v68 = vmul.f32 %v56, %v67
    %s69 = sld [smem:[#allocation2]]
    %vm70 = vcmask 7168
    %v71 = vsel %vm70, %v68, 0.0
    %72 = vadd.xlane.f32.xlu0 %v71
    %v73 = vpop.xlane.xlu0 %72
    %v74 = vrot.slane %v73, 4
    %v75 = vadd.f32 %v73, %v74
    %v76 = vrot.slane %v75, 2
    %v77 = vadd.f32 %v75, %v76
    %v78 = vrot.slane %v77, 1
    %v79 = vadd.f32 %v77, %v78
    %s80 = vtos %v79
    %s81 = sadd.f32 %s69, %s80
    %s82 = scalar_lea.smem [#allocation2], 0
    %83 = sst [smem:[%s82]] %s81
    // Predicated region
    $region22: #{tpu_custom_call.1} parent=1 // pred_check
      %p84 = pneg %p44
    $region23: #{tpu_custom_call.1} parent=1 // pred_check_branch
      %86 = sbr.rel (%p84) target = $region25
    $region24: #{tpu_custom_call.1} parent=1 // pred_region
      %s87 = sld [smem:[#allocation2]]
      %v88 = vstv %s87
      %89 = vst [vmem:[#allocation8] sm:$0xff] %v88
    $region25: #{tpu_custom_call.1} parent=1 // pred_fallthru
      _
    // Predicated region
    $region26: #{tpu_custom_call.1} parent=1 // pred_check
      _
    $region27: #{tpu_custom_call.1} parent=1 // pred_check_branch
      %91 = sbr.rel (0) target = $region29
    $region28: #{tpu_custom_call.1} parent=1 // pred_region
      %s93 = ssub.s32 128, 128
      %94 = vsyncadd [#allocation5], %s93
      %s96 = sshll.u32 [#allocation8], 4
      %s97 = int_to_ptr.vmem [resolvable:$true] %s96
      %99 = dma.vmem_to_hbm [thread:$0]  %s97, 128, %s2, [#allocation5]
    $region29: #{tpu_custom_call.1} parent=1 // pred_fallthru
      _
    // Predicated region
    $region30: #{tpu_custom_call.1} parent=1 // pred_check
      _
    $region31: #{tpu_custom_call.1} parent=1 // pred_check_branch
      %101 = sbr.rel (0) target = $region33
    $region32: #{tpu_custom_call.1} parent=1 // pred_region
      %102 = dma.done [#allocation5], 128
    $region33: #{tpu_custom_call.1} parent=1 // pred_fallthru
      _
    %103 = vsyncpa [#allocation4], 1
    %104 = vsyncpa [#allocation7], 1
    %105 = vsyncpa [#allocation5], 1

</llo_original>
